<compile_context>
chip_gen: v5e
topology: v5e:2x2
jax: 0.10.0
libtpu: 0.0.40
codegen_flags: <defaults>
</compile_context>

<pallas_src>
import jax
import jax.numpy as jnp
from jax.experimental import pallas as pl
from jax.experimental.pallas import tpu as pltpu

VOCAB = 4500
INPUT_SIZE = 16            # embedding_dim
HIDDEN_SIZE = 32
NUM_TOKENS = 2             # view(1, -1) into Linear(input_size*2) => exactly 2 tokens
NUM_CLASSES = 2
FEAT = NUM_TOKENS * INPUT_SIZE   # 32 = concatenated embedding width

TILE_B = 128               # names per grid step (MXU-friendly M tile; grid=2 at B=256)

# Packed-parameter layout: single (PARAM_ROWS, PARAM_LANES) f32 array.
PARAM_LANES = HIDDEN_SIZE                     # 32 lanes (equals full array last dim)
W1_ROW = 0                                    # rows [0, 32): W1 (FEAT x HIDDEN)
B1_ROW = FEAT                                 # row 32: b1 in lanes [0, HIDDEN)
BDS_ROW = B1_ROW + 1                          # row 33: bias diffs in lanes [0, 2)
WDS_ROW = ((BDS_ROW + 1 + 7) // 8) * 8        # row 40 (8-aligned): wds rows [40, 72)
PARAM_ROWS = WDS_ROW + HIDDEN_SIZE            # 72


def name_verifier_kernel(x_ref,        # VMEM, (TILE_B, FEAT) f32  — gathered embeddings
                         params_ref,   # VMEM, (PARAM_ROWS, PARAM_LANES) f32 — resident
                         out_ref):     # VMEM, (TILE_B, NUM_CLASSES) f32
    # ---- unpack parameters (static slices of the single packed operand) -------
    w1 = params_ref[W1_ROW:W1_ROW + FEAT, 0:HIDDEN_SIZE]            # (32, 32)
    b1 = params_ref[B1_ROW:B1_ROW + 1, 0:HIDDEN_SIZE]               # (1, 32)
    bds = params_ref[BDS_ROW:BDS_ROW + 1, 0:NUM_CLASSES]            # (1, 2)
    wds = params_ref[WDS_ROW:WDS_ROW + HIDDEN_SIZE, 0:NUM_CLASSES]  # (32, 2)

    # ---- hidden = ReLU(x @ W1 + b1) --------------------------------------------
    x = x_ref[...]                                                   # (TILE_B, 32)
    h = jnp.maximum(
        jnp.dot(x, w1, preferred_element_type=jnp.float32) + b1, 0.0)

    # ---- exact 2-class softmax via the sigmoid identity ------------------------
    # d[:, j] = logit_j - logit_{1-j}  (antisymmetric difference weights),
    # so sigmoid(d) == softmax(logits) exactly, and rows sum to 1.
    d = jnp.dot(h, wds, preferred_element_type=jnp.float32) + bds    # (TILE_B, 2)
    out_ref[...] = 1.0 / (1.0 + jnp.exp(-d))


def _pack_params(w1, b1, w2, b2):
    """Pack W1/b1 and the class-difference form of W2/b2 into one VMEM operand."""
    w1 = jnp.asarray(w1, jnp.float32)                 # (FEAT, HIDDEN)
    b1 = jnp.asarray(b1, jnp.float32).reshape(-1)     # (HIDDEN,)
    w2 = jnp.asarray(w2, jnp.float32)                 # (HIDDEN, 2)
    b2 = jnp.asarray(b2, jnp.float32).reshape(-1)     # (2,)
    wds = jnp.stack([w2[:, 0] - w2[:, 1], w2[:, 1] - w2[:, 0]], axis=1)  # (HIDDEN, 2)
    bds = jnp.stack([b2[0] - b2[1], b2[1] - b2[0]])                      # (2,)

    p = jnp.zeros((PARAM_ROWS, PARAM_LANES), jnp.float32)
    p = p.at[W1_ROW:W1_ROW + FEAT, 0:HIDDEN_SIZE].set(w1)
    p = p.at[B1_ROW, 0:HIDDEN_SIZE].set(b1)
    p = p.at[BDS_ROW, 0:NUM_CLASSES].set(bds)
    p = p.at[WDS_ROW:WDS_ROW + HIDDEN_SIZE, 0:NUM_CLASSES].set(wds)
    return p


def name_verifier_forward(token_ids, emb, w1, b1, w2, b2, *, tile_b=TILE_B):
    """token_ids: (B, NUM_TOKENS) int32.  Returns (B, NUM_CLASSES) f32 softmax probs.

    Per-name math is identical to the torch module's batch-of-1 forward.
    """
    assert tile_b % 8 == 0
    token_ids = jnp.asarray(token_ids, jnp.int32)
    batch = token_ids.shape[0]
    b_pad = pl.cdiv(batch, tile_b) * tile_b

    # Hoisted embedding gather (XLA gather) -> (B, 2*INPUT_SIZE) activations.
    # TODO(synk): torch's nn.Embedding raises on out-of-range ids; here they are
    # clamped to [0, VOCAB-1] instead of raising.
    ids = jnp.clip(token_ids, 0, VOCAB - 1)
    x = jnp.take(jnp.asarray(emb, jnp.float32), ids, axis=0).reshape(batch, FEAT)
    x = jnp.pad(x, ((0, b_pad - batch), (0, 0)))      # padded rows are harmless zeros

    params = _pack_params(w1, b1, w2, b2)

    out_padded = pl.pallas_call(
        name_verifier_kernel,
        out_shape=jax.ShapeDtypeStruct((b_pad, NUM_CLASSES), jnp.float32),
        grid=(b_pad // tile_b,),
        in_specs=[
            # Activations: pipelined per-tile block.
            pl.BlockSpec((tile_b, FEAT), lambda i: (i, 0)),
            # Packed params: constant index_map => fetched once, VMEM-resident.
            pl.BlockSpec((PARAM_ROWS, PARAM_LANES), lambda i: (0, 0)),
        ],
        out_specs=pl.BlockSpec((tile_b, NUM_CLASSES), lambda i: (i, 0)),
        compiler_params=pltpu.CompilerParams(
            dimension_semantics=("parallel",),        # shards grid across v7x's 2 TCs
            vmem_limit_bytes=32 * 1024 * 1024),
    )(x, params)

    return out_padded[:batch]


def reference_forward(token_ids, emb, w1, b1, w2, b2):
    x = emb[token_ids].reshape(token_ids.shape[0], -1)
    h = jnp.maximum(x @ w1 + b1, 0.0)
    logits = h @ w2 + b2
    return jax.nn.softmax(logits, axis=1)


if __name__ == "__main__":
    key = jax.random.PRNGKey(0)
    k_emb, k_w1, k_b1, k_w2, k_b2, k_ids = jax.random.split(key, 6)

    # Deterministic parameter init (torch-like: N(0,1) embedding, uniform linears).
    emb = jax.random.normal(k_emb, (VOCAB, INPUT_SIZE), dtype=jnp.float32)
    bound1 = 1.0 / jnp.sqrt(2.0 * INPUT_SIZE)
    w1 = jax.random.uniform(k_w1, (FEAT, HIDDEN_SIZE),
                            minval=-bound1, maxval=bound1, dtype=jnp.float32)
    b1 = jax.random.uniform(k_b1, (HIDDEN_SIZE,),
                            minval=-bound1, maxval=bound1, dtype=jnp.float32)
    bound2 = 1.0 / jnp.sqrt(float(HIDDEN_SIZE))
    w2 = jax.random.uniform(k_w2, (HIDDEN_SIZE, NUM_CLASSES),
                            minval=-bound2, maxval=bound2, dtype=jnp.float32)
    b2 = jax.random.uniform(k_b2, (NUM_CLASSES,),
                            minval=-bound2, maxval=bound2, dtype=jnp.float32)

    # A small batch of names, each = 2 token ids (the module's forward implies 2).
    B = 256
    token_ids = jax.random.randint(k_ids, (B, NUM_TOKENS), 0, VOCAB, dtype=jnp.int32)

    out = name_verifier_forward(token_ids, emb, w1, b1, w2, b2)
    out = jax.block_until_ready(out)

    ref = reference_forward(token_ids, emb, w1, b1, w2, b2)
    assert out.shape == (B, NUM_CLASSES)
    assert jnp.allclose(out, ref, atol=1e-4, rtol=1e-4), (out[:4], ref[:4])
    assert jnp.allclose(jnp.sum(out, axis=1), 1.0, atol=1e-4)

    print("KERNEL_OK")
</pallas_src>

<mosaic_0001>
module attributes {stable_mosaic.version = 11 : i64} {
  func.func @name_verifier_kernel(%arg0: i32, %arg1: memref<128x32xf32, #tpu.memory_space<vmem>>, %arg2: memref<72x32xf32, #tpu.memory_space<vmem>>, %arg3: memref<128x2xf32, #tpu.memory_space<vmem>>) attributes {dimension_semantics = [#tpu.dimension_semantics<parallel>], iteration_bounds = array<i64: 2>, scalar_prefetch = 0 : i64, scratch_operands = 0 : i64, tpu.core_type = #tpu.core_type<tc>, window_params = [{transform_indices = @transform_0, window_bounds = array<i64: 128, 32>}, {pipeline_mode = #tpu.pipeline_mode<synchronous>, transform_indices = @transform_1, window_bounds = array<i64: 72, 32>}, {transform_indices = @transform_2, window_bounds = array<i64: 128, 2>}]} {
    %c0 = arith.constant 0 : index
    %c0_0 = arith.constant 0 : index
    %0 = vector.load %arg2[%c0, %c0_0] : memref<72x32xf32, #tpu.memory_space<vmem>>, vector<32x32xf32>
    %c32 = arith.constant 32 : index
    %c0_1 = arith.constant 0 : index
    %1 = vector.load %arg2[%c32, %c0_1] : memref<72x32xf32, #tpu.memory_space<vmem>>, vector<1x32xf32>
    %c33 = arith.constant 33 : index
    %c0_2 = arith.constant 0 : index
    %2 = vector.load %arg2[%c33, %c0_2] : memref<72x32xf32, #tpu.memory_space<vmem>>, vector<1x2xf32>
    %c40 = arith.constant 40 : index
    %c0_3 = arith.constant 0 : index
    %3 = vector.load %arg2[%c40, %c0_3] : memref<72x32xf32, #tpu.memory_space<vmem>>, vector<32x2xf32>
    %c0_4 = arith.constant 0 : index
    %c0_5 = arith.constant 0 : index
    %4 = vector.load %arg1[%c0_4, %c0_5] : memref<128x32xf32, #tpu.memory_space<vmem>>, vector<128x32xf32>
    %cst = arith.constant dense<0.000000e+00> : vector<128x32xf32>
    %5 = tpu.matmul %4, %0, %cst {dimension_numbers = #tpu.dot_dimension_numbers<[1], [0], [0], [1], [0, 0, 1, 1], [], []>} : vector<128x32xf32>, vector<32x32xf32>, vector<128x32xf32> -> vector<128x32xf32>
    %6 = vector.broadcast %1 : vector<1x32xf32> to vector<128x32xf32>
    %7 = arith.addf %5, %6 : vector<128x32xf32>
    %cst_6 = arith.constant 0.000000e+00 : f32
    %8 = vector.broadcast %cst_6 : f32 to vector<128x32xf32>
    %9 = arith.maximumf %7, %8 : vector<128x32xf32>
    %cst_7 = arith.constant dense<0.000000e+00> : vector<128x2xf32>
    %10 = tpu.matmul %9, %3, %cst_7 {dimension_numbers = #tpu.dot_dimension_numbers<[1], [0], [0], [1], [0, 0, 1, 1], [], []>} : vector<128x32xf32>, vector<32x2xf32>, vector<128x2xf32> -> vector<128x2xf32>
    %11 = vector.broadcast %2 : vector<1x2xf32> to vector<128x2xf32>
    %12 = arith.addf %10, %11 : vector<128x2xf32>
    %cst_8 = arith.constant 0.000000e+00 : f32
    %13 = vector.broadcast %cst_8 : f32 to vector<128x2xf32>
    %14 = arith.subf %13, %12 : vector<128x2xf32>
    %15 = math.exp %14 : vector<128x2xf32>
    %cst_9 = arith.constant 1.000000e+00 : f32
    %16 = vector.broadcast %cst_9 : f32 to vector<128x2xf32>
    %17 = arith.addf %16, %15 : vector<128x2xf32>
    %cst_10 = arith.constant 1.000000e+00 : f32
    %18 = vector.broadcast %cst_10 : f32 to vector<128x2xf32>
    %19 = arith.divf %18, %17 : vector<128x2xf32>
    %c0_11 = arith.constant 0 : index
    %c0_12 = arith.constant 0 : index
    %20 = vector.load %arg3[%c0_11, %c0_12] : memref<128x2xf32, #tpu.memory_space<vmem>>, vector<128x2xf32>
    tpu.vector_store %arg3[%c0_11, %c0_12], %19 {strides = array<i32>} : memref<128x2xf32, #tpu.memory_space<vmem>>, vector<128x2xf32>,
    return
  }
  func.func @transform_0(%arg0: i32) -> (i32, i32) {
    %c0_i32 = arith.constant 0 : i32
    %c0_i32_0 = arith.constant 0 : i32
    return %arg0, %c0_i32 : i32, i32
  }
  func.func @transform_1(%arg0: i32) -> (i32, i32) {
    %c0_i32 = arith.constant 0 : i32
    %c0_i32_0 = arith.constant 0 : i32
    %c0_i32_1 = arith.constant 0 : i32
    return %c0_i32, %c0_i32_0 : i32, i32
  }
  func.func @transform_2(%arg0: i32) -> (i32, i32) {
    %c0_i32 = arith.constant 0 : i32
    %c0_i32_0 = arith.constant 0 : i32
    return %arg0, %c0_i32 : i32, i32
  }
}

</mosaic_0001>

<llo_original>
// kernel: tpu_custom_call.1
$region0: #{tpu_custom_call.1}
  #allocation0 [shape = 'u32[]', space=smem, size = 0x4, offset = 0x4, fixed_abs, tag = 'smem constant byte address 0x4 - core index']
  #allocation1 [shape = 'u32[72,128]{1,0:T(1,128)}', space=vmem, size = 0x9000, scoped, tag = 'internal scratch']
  %s0 = inlined_call_operand.vmem [shape: f32[256,32], index: 0, kind: input, shape index: {}]
  %s1 = inlined_call_operand.vmem [shape: f32[72,32], index: 1, kind: input, shape index: {}]
  %s2 = inlined_call_operand.vmem [shape: f32[256,2], index: 2, kind: output, shape index: {}]
  %s3 = sld [smem:[#allocation0]]
  $region41: #{tpu_custom_call.1} parent=0
    _
  %s5 = ssub.s32 1, %s3
  %s6 = scalar_select 0, %s5, %s3
  loop: start=0, step=1, limit=4
  $region2: #{tpu_custom_call.1} parent=0 // loop_pre_header
    _
  $region3: #{tpu_custom_call.1} parent=0 // loop_header
    %s8 = sphi 0, %s12
    %p9 = scmp.ge.s32.totalorder %s8, 4
    %s18 = sphi 0, %s20
    %s21 = sphi 0, %s18
    %s22 = sphi 0, %s21
    %s38 = sphi 0, %s22
    %s42 = sphi 0, %s42
    %s44 = sphi 0, %s42
    %s45 = sphi 0, %s44
    %s59 = sphi 0, %s45
    %s65 = sphi 0, %s67
    %s68 = sphi 0, %s65
    %s69 = sphi 0, %s68
    %s85 = sphi 0, %s69
  $region4: #{tpu_custom_call.1} parent=0 // loop_header_branch
    %11 = sbr.rel (%p9) target = $region8
  $region5: #{tpu_custom_call.1} parent=0 // loop_body
    %s13 = ssub.s32 %s8, 1
    %s14 = ssub.s32 %s8, 2
    %s15 = sadd.s32 %s8, 1
    %s16 = ssub.s32 %s8, %s15
    %p17 = scmp.eq.s32.totalorder %s16, 0
    %s19 = sadd.s32 %s18, 1
    %s20 = scalar_select %p17, %s18, %s19
    %p23 = pneg %p17
    %p24 = scmp.eq.s32.totalorder %s8, 1
    %p25 = por %p23, %p24
    %p26 = scmp.ne.s32.totalorder %s18, %s21
    %p27 = scmp.eq.s32.totalorder %s8, 0
    %p28 = por %p26, %p27
    %p29 = scmp.ne.s32.totalorder %s18, %s21
    %p30 = scmp.eq.s32.totalorder %s13, 1
    %p31 = por %p29, %p30
    %p32 = scmp.ne.s32.totalorder %s21, %s22
    %p33 = scmp.eq.s32.totalorder %s13, 0
    %p34 = por %p32, %p33
    %p35 = scmp.ne.s32.totalorder %s21, %s22
    %p36 = scmp.eq.s32.totalorder %s14, 1
    %p37 = por %p35, %p36
    %p39 = scmp.ne.s32.totalorder %s22, %s38
    %p40 = scmp.eq.s32.totalorder %s14, 0
    %p41 = por %p39, %p40
    %s43 = sadd.s32 %s42, 1
    %p46 = scmp.eq.s32.totalorder %s8, 1
    %p47 = scmp.ne.s32.totalorder %s42, %s44
    %p48 = scmp.eq.s32.totalorder %s8, 0
    %p49 = por %p47, %p48
    %p50 = scmp.ne.s32.totalorder %s42, %s44
    %p51 = scmp.eq.s32.totalorder %s13, 1
    %p52 = por %p50, %p51
    %p53 = scmp.ne.s32.totalorder %s44, %s45
    %p54 = scmp.eq.s32.totalorder %s13, 0
    %p55 = por %p53, %p54
    %p56 = scmp.ne.s32.totalorder %s44, %s45
    %p57 = scmp.eq.s32.totalorder %s14, 1
    %p58 = por %p56, %p57
    %p60 = scmp.ne.s32.totalorder %s45, %s59
    %p61 = scmp.eq.s32.totalorder %s14, 0
    %p62 = por %p60, %p61
    %s63 = ssub.s32 %s8, %s15
    %p64 = scmp.eq.s32.totalorder %s63, 0
    %s66 = sadd.s32 %s65, 1
    %s67 = scalar_select %p64, %s65, %s66
    %p70 = pneg %p64
    %p71 = scmp.eq.s32.totalorder %s8, 1
    %p72 = por %p70, %p71
    %p73 = scmp.ne.s32.totalorder %s65, %s68
    %p74 = scmp.eq.s32.totalorder %s8, 0
    %p75 = por %p73, %p74
    %p76 = scmp.ne.s32.totalorder %s65, %s68
    %p77 = scmp.eq.s32.totalorder %s13, 1
    %p78 = por %p76, %p77
    %p79 = scmp.ne.s32.totalorder %s68, %s69
    %p80 = scmp.eq.s32.totalorder %s13, 0
    %p81 = por %p79, %p80
    %p82 = scmp.ne.s32.totalorder %s68, %s69
    %p83 = scmp.eq.s32.totalorder %s14, 1
    %p84 = por %p82, %p83
    %p86 = scmp.ne.s32.totalorder %s69, %s85
    %p87 = scmp.eq.s32.totalorder %s14, 0
    %p88 = por %p86, %p87
    %p89 = scmp.le.s32.totalorder 1, %s8
    %p90 = scmp.lt.s32.totalorder %s8, 3
    %p91 = pnand %p89, %p90
    %p92 = pneg %p91
    // Predicated region
    $region9: #{tpu_custom_call.1} parent=5 // pred_check
      _
    $region10: #{tpu_custom_call.1} parent=5 // pred_check_branch
      %94 = sbr.rel (%p91) target = $region12
    $region11: #{tpu_custom_call.1} parent=5 // pred_region
      %s95 = ssub.s32 %s8, 1
      // Predicated region
      $region13: #{tpu_custom_call.1} parent=11 // pred_check
        %p96 = pneg %p55
      $region14: #{tpu_custom_call.1} parent=11 // pred_check_branch
        %98 = sbr.rel (%p96) target = $region16
      $region15: #{tpu_custom_call.1} parent=11 // pred_region
        _
      $region16: #{tpu_custom_call.1} parent=11 // pred_fallthru
        _
    $region12: #{tpu_custom_call.1} parent=5 // pred_fallthru
      _
    %p99 = scmp.lt.s32.totalorder %s8, 2
    // Predicated region
    $region17: #{tpu_custom_call.1} parent=5 // pred_check
      %p100 = pneg %p99
    $region18: #{tpu_custom_call.1} parent=5 // pred_check_branch
      %102 = sbr.rel (%p100) target = $region20
    $region19: #{tpu_custom_call.1} parent=5 // pred_region
      // Predicated region
      $region21: #{tpu_custom_call.1} parent=19 // pred_check
        %p103 = pneg %p28
      $region22: #{tpu_custom_call.1} parent=19 // pred_check_branch
        %105 = sbr.rel (%p103) target = $region24
      $region23: #{tpu_custom_call.1} parent=19 // pred_region
        %s106 = smul.u32 16, %s8
        %p107 = scmp.lt.s32.totalorder %s106, 31
        %s108 = scalar_select %p107, %s106, 31
        %s109 = smul.addr %s108, 8
        %s110 = scalar_lea.vmem %s0, %s109
        %s111 = smul.u32 16, %s8
      $region24: #{tpu_custom_call.1} parent=19 // pred_fallthru
        _
    $region20: #{tpu_custom_call.1} parent=5 // pred_fallthru
      _
    %p112 = scmp.le.s32.totalorder 1, %s8
    %p113 = scmp.lt.s32.totalorder %s8, 3
    %p114 = pnand %p112, %p113
    %p115 = pneg %p114
    // Predicated region
    $region25: #{tpu_custom_call.1} parent=5 // pred_check
      _
    $region26: #{tpu_custom_call.1} parent=5 // pred_check_branch
      %117 = sbr.rel (%p114) target = $region28
    $region27: #{tpu_custom_call.1} parent=5 // pred_region
      %s118 = ssub.s32 %s8, 1
      %s119 = smul.u32 16, %s13
      %p120 = scmp.lt.s32.totalorder %s119, 31
      %s121 = scalar_select %p120, %s119, 31
      %s122 = smul.addr %s121, 8
      %s123 = scalar_lea.vmem %s0, %s122
      %p124 = pneg %p34
      %p125 = pneg %p31
      %p126 = pneg %p55
      %p127 = pneg %p52
      %p128 = pneg %p81
      %p129 = pneg %p78
      %s130 = smul.u32 16, %s13
      %p131 = scmp.lt.s32.totalorder %s130, 31
      %s132 = scalar_select %p131, %s130, 31
      %s133 = smul.addr %s132, 8
      %s134 = scalar_lea.vmem %s2, %s133
      %s135 = smul.u32 16, %s13
      %p136 = scmp.lt.s32.totalorder %s135, 31
      %s137 = scalar_select %p136, %s135, 31
      %s138 = smul.addr %s137, 8
      %s139 = scalar_lea.vmem %s0, %s138
      %s140 = smul.u32 16, %s13
      %s141 = smul.u32 16, %s13
      %p142 = scmp.lt.s32.totalorder %s141, 31
      %s143 = scalar_select %p142, %s141, 31
      %s144 = smul.addr %s143, 8
      %s145 = scalar_lea.vmem %s2, %s144
      %s146 = smul.u32 16, %s13
      %v147 = vld [vmem:[%s1] sm:$0xff]
      %v148 = vld [vmem:[%s1 + $0x8] sm:$0xff]
      %v149 = vld [vmem:[%s1 + $0x10] sm:$0xff]
      %v150 = vld [vmem:[%s1 + $0x18] sm:$0xff]
      %v151 = vld [vmem:[%s1 + $0x20] sm:$0x1]
      %v152 = vld [vmem:[%s1 + $0x21] sm:$0x1]
      %v153 = vld [vmem:[%s1 + $0x28] sm:$0xff]
      %v154 = vld [vmem:[%s1 + $0x30] sm:$0xff]
      %v155 = vld [vmem:[%s1 + $0x38] sm:$0xff]
      %v156 = vld [vmem:[%s1 + $0x40] sm:$0xff]
      %v157 = vld [vmem:[%s139] sm:$0xff]
      %v158 = vld [vmem:[%s139 + $0x8] sm:$0xff]
      %v159 = vld [vmem:[%s139 + $0x10] sm:$0xff]
      %v160 = vld [vmem:[%s139 + $0x18] sm:$0xff]
      %v161 = vld [vmem:[%s139 + $0x20] sm:$0xff]
      %v162 = vld [vmem:[%s139 + $0x28] sm:$0xff]
      %v163 = vld [vmem:[%s139 + $0x30] sm:$0xff]
      %v164 = vld [vmem:[%s139 + $0x38] sm:$0xff]
      %v165 = vld [vmem:[%s139 + $0x40] sm:$0xff]
      %v166 = vld [vmem:[%s139 + $0x48] sm:$0xff]
      %v167 = vld [vmem:[%s139 + $0x50] sm:$0xff]
      %v168 = vld [vmem:[%s139 + $0x58] sm:$0xff]
      %v169 = vld [vmem:[%s139 + $0x60] sm:$0xff]
      %v170 = vld [vmem:[%s139 + $0x68] sm:$0xff]
      %v171 = vld [vmem:[%s139 + $0x70] sm:$0xff]
      %v172 = vld [vmem:[%s139 + $0x78] sm:$0xff]
      %v173 = vperm.slane %v151, 0
      %vm174 = vcmask 261120
      %v176 = vsel %vm174, %v157, 0
      %v179 = vsel %vm174, %v158, 0
      %v182 = vsel %vm174, %v159, 0
      %v185 = vsel %vm174, %v160, 0
      %v188 = vsel %vm174, %v161, 0
      %v191 = vsel %vm174, %v162, 0
      %v194 = vsel %vm174, %v163, 0
      %v197 = vsel %vm174, %v164, 0
      %v200 = vsel %vm174, %v165, 0
      %v203 = vsel %vm174, %v166, 0
      %v206 = vsel %vm174, %v167, 0
      %v209 = vsel %vm174, %v168, 0
      %v212 = vsel %vm174, %v169, 0
      %v215 = vsel %vm174, %v170, 0
      %v218 = vsel %vm174, %v171, 0
      %v221 = vsel %vm174, %v172, 0
      %223 = vmatpush.msra.mxu0 0.0
      %224 = vmatpush.msra.mxu0 0.0
      %225 = vmatpush.msra.mxu0 0.0
      %226 = vmatpush.msra.mxu0 0.0
      %227 = vmatpush.msra.mxu0 0.0
      %228 = vmatpush.msra.mxu0 0.0
      %229 = vmatpush.msra.mxu0 0.0
      %230 = vmatpush.msra.mxu0 0.0
      %231 = vmatpush.msra.mxu0 0.0
      %232 = vmatpush.msra.mxu0 0.0
      %233 = vmatpush.msra.mxu0 0.0
      %234 = vmatpush.msra.mxu0 0.0
      %235 = vmatpush.msra.mxu0 %v150
      %236 = vmatpush.msra.mxu0 %v149
      %237 = vmatpush.msra.mxu0 %v148
      %238 = vmatpush.msra.mxu0 %v147
      %239 = vmatmul.f32.gmra.mxu0 %v176
      %v240 = vpop.f32.mrf.mxu0
      %v241 = vadd.f32 %v173, %v240
      %242 = vmatmul.f32.gmra.mxu0 %v179
      %v243 = vpop.f32.mrf.mxu0
      %v244 = vadd.f32 %v173, %v243
      %245 = vmatmul.f32.gmra.mxu0 %v182
      %v246 = vpop.f32.mrf.mxu0
      %v247 = vadd.f32 %v173, %v246
      %248 = vmatmul.f32.gmra.mxu0 %v185
      %v249 = vpop.f32.mrf.mxu0
      %v250 = vadd.f32 %v173, %v249
      %251 = vmatmul.f32.gmra.mxu0 %v188
      %v252 = vpop.f32.mrf.mxu0
      %v253 = vadd.f32 %v173, %v252
      %254 = vmatmul.f32.gmra.mxu0 %v191
      %v255 = vpop.f32.mrf.mxu0
      %v256 = vadd.f32 %v173, %v255
      %257 = vmatmul.f32.gmra.mxu0 %v194
      %v258 = vpop.f32.mrf.mxu0
      %v259 = vadd.f32 %v173, %v258
      %260 = vmatmul.f32.gmra.mxu0 %v197
      %v261 = vpop.f32.mrf.mxu0
      %v262 = vadd.f32 %v173, %v261
      %263 = vmatmul.f32.gmra.mxu0 %v200
      %v264 = vpop.f32.mrf.mxu0
      %v265 = vadd.f32 %v173, %v264
      %266 = vmatmul.f32.gmra.mxu0 %v203
      %v267 = vpop.f32.mrf.mxu0
      %v268 = vadd.f32 %v173, %v267
      %269 = vmatmul.f32.gmra.mxu0 %v206
      %v270 = vpop.f32.mrf.mxu0
      %v271 = vadd.f32 %v173, %v270
      %272 = vmatmul.f32.gmra.mxu0 %v209
      %v273 = vpop.f32.mrf.mxu0
      %v274 = vadd.f32 %v173, %v273
      %275 = vmatmul.f32.gmra.mxu0 %v212
      %v276 = vpop.f32.mrf.mxu0
      %v277 = vadd.f32 %v173, %v276
      %278 = vmatmul.f32.gmra.mxu0 %v215
      %v279 = vpop.f32.mrf.mxu0
      %v280 = vadd.f32 %v173, %v279
      %281 = vmatmul.f32.gmra.mxu0 %v218
      %v282 = vpop.f32.mrf.mxu0
      %v283 = vadd.f32 %v173, %v282
      %284 = vmatmul.f32.gmra.mxu0 %v221
      %v285 = vpop.f32.mrf.mxu0
      %v286 = vadd.f32 %v173, %v285
      %287 = vdwg.mxu0
      %v288 = vmax.f32 %v241, 0.0
      %v289 = vmax.f32 %v244, 0.0
      %v290 = vmax.f32 %v247, 0.0
      %v291 = vmax.f32 %v250, 0.0
      %v292 = vmax.f32 %v253, 0.0
      %v293 = vmax.f32 %v256, 0.0
      %v294 = vmax.f32 %v259, 0.0
      %v295 = vmax.f32 %v262, 0.0
      %v296 = vmax.f32 %v265, 0.0
      %v297 = vmax.f32 %v268, 0.0
      %v298 = vmax.f32 %v271, 0.0
      %v299 = vmax.f32 %v274, 0.0
      %v300 = vmax.f32 %v277, 0.0
      %v301 = vmax.f32 %v280, 0.0
      %v302 = vmax.f32 %v283, 0.0
      %v303 = vmax.f32 %v286, 0.0
      %v304 = vperm.slane %v152, 0
      %v306 = vsel %vm174, %v288, 0
      %v309 = vsel %vm174, %v289, 0
      %v312 = vsel %vm174, %v290, 0
      %v315 = vsel %vm174, %v291, 0
      %v318 = vsel %vm174, %v292, 0
      %v321 = vsel %vm174, %v293, 0
      %v324 = vsel %vm174, %v294, 0
      %v327 = vsel %vm174, %v295, 0
      %v330 = vsel %vm174, %v296, 0
      %v333 = vsel %vm174, %v297, 0
      %v336 = vsel %vm174, %v298, 0
      %v339 = vsel %vm174, %v299, 0
      %v342 = vsel %vm174, %v300, 0
      %v345 = vsel %vm174, %v301, 0
      %v348 = vsel %vm174, %v302, 0
      %v351 = vsel %vm174, %v303, 0
      %353 = vmatpush.msra.mxu0 0.0
      %354 = vmatpush.msra.mxu0 0.0
      %355 = vmatpush.msra.mxu0 0.0
      %356 = vmatpush.msra.mxu0 0.0
      %357 = vmatpush.msra.mxu0 0.0
      %358 = vmatpush.msra.mxu0 0.0
      %359 = vmatpush.msra.mxu0 0.0
      %360 = vmatpush.msra.mxu0 0.0
      %361 = vmatpush.msra.mxu0 0.0
      %362 = vmatpush.msra.mxu0 0.0
      %363 = vmatpush.msra.mxu0 0.0
      %364 = vmatpush.msra.mxu0 0.0
      %365 = vmatpush.msra.mxu0 %v156
      %366 = vmatpush.msra.mxu0 %v155
      %367 = vmatpush.msra.mxu0 %v154
      %368 = vmatpush.msra.mxu0 %v153
      %369 = vmatmul.f32.gmra.mxu0 %v306
      %v370 = vpop.f32.mrf.mxu0
      %v371 = vadd.f32 %v304, %v370
      %372 = vmatmul.f32.gmra.mxu0 %v309
      %v373 = vpop.f32.mrf.mxu0
      %v374 = vadd.f32 %v304, %v373
      %375 = vmatmul.f32.gmra.mxu0 %v312
      %v376 = vpop.f32.mrf.mxu0
      %v377 = vadd.f32 %v304, %v376
      %378 = vmatmul.f32.gmra.mxu0 %v315
      %v379 = vpop.f32.mrf.mxu0
      %v380 = vadd.f32 %v304, %v379
      %381 = vmatmul.f32.gmra.mxu0 %v318
      %v382 = vpop.f32.mrf.mxu0
      %v383 = vadd.f32 %v304, %v382
      %384 = vmatmul.f32.gmra.mxu0 %v321
      %v385 = vpop.f32.mrf.mxu0
      %v386 = vadd.f32 %v304, %v385
      %387 = vmatmul.f32.gmra.mxu0 %v324
      %v388 = vpop.f32.mrf.mxu0
      %v389 = vadd.f32 %v304, %v388
      %390 = vmatmul.f32.gmra.mxu0 %v327
      %v391 = vpop.f32.mrf.mxu0
      %v392 = vadd.f32 %v304, %v391
      %393 = vmatmul.f32.gmra.mxu0 %v330
      %v394 = vpop.f32.mrf.mxu0
      %v395 = vadd.f32 %v304, %v394
      %396 = vmatmul.f32.gmra.mxu0 %v333
      %v397 = vpop.f32.mrf.mxu0
      %v398 = vadd.f32 %v304, %v397
      %399 = vmatmul.f32.gmra.mxu0 %v336
      %v400 = vpop.f32.mrf.mxu0
      %v401 = vadd.f32 %v304, %v400
      %402 = vmatmul.f32.gmra.mxu0 %v339
      %v403 = vpop.f32.mrf.mxu0
      %v404 = vadd.f32 %v304, %v403
      %405 = vmatmul.f32.gmra.mxu0 %v342
      %v406 = vpop.f32.mrf.mxu0
      %v407 = vadd.f32 %v304, %v406
      %408 = vmatmul.f32.gmra.mxu0 %v345
      %v409 = vpop.f32.mrf.mxu0
      %v410 = vadd.f32 %v304, %v409
      %411 = vmatmul.f32.gmra.mxu0 %v348
      %v412 = vpop.f32.mrf.mxu0
      %v413 = vadd.f32 %v304, %v412
      %414 = vmatmul.f32.gmra.mxu0 %v351
      %v415 = vpop.f32.mrf.mxu0
      %v416 = vadd.f32 %v304, %v415
      %417 = vdwg.mxu0
      %v418 = vsub.f32 0.0, %v371
      %v419 = vsub.f32 0.0, %v374
      %v420 = vsub.f32 0.0, %v377
      %v421 = vsub.f32 0.0, %v380
      %v422 = vsub.f32 0.0, %v383
      %v423 = vsub.f32 0.0, %v386
      %v424 = vsub.f32 0.0, %v389
      %v425 = vsub.f32 0.0, %v392
      %v426 = vsub.f32 0.0, %v395
      %v427 = vsub.f32 0.0, %v398
      %v428 = vsub.f32 0.0, %v401
      %v429 = vsub.f32 0.0, %v404
      %v430 = vsub.f32 0.0, %v407
      %v431 = vsub.f32 0.0, %v410
      %v432 = vsub.f32 0.0, %v413
      %v433 = vsub.f32 0.0, %v416
      %v434 = vmul.f32 %v418, 1.442695
      %v435 = vpow.pop %v434
      %v436 = vmul.f32 %v419, 1.442695
      %v437 = vpow.pop %v436
      %v438 = vmul.f32 %v420, 1.442695
      %v439 = vpow.pop %v438
      %v440 = vmul.f32 %v421, 1.442695
      %v441 = vpow.pop %v440
      %v442 = vmul.f32 %v422, 1.442695
      %v443 = vpow.pop %v442
      %v444 = vmul.f32 %v423, 1.442695
      %v445 = vpow.pop %v444
      %v446 = vmul.f32 %v424, 1.442695
      %v447 = vpow.pop %v446
      %v448 = vmul.f32 %v425, 1.442695
      %v449 = vpow.pop %v448
      %v450 = vmul.f32 %v426, 1.442695
      %v451 = vpow.pop %v450
      %v452 = vmul.f32 %v427, 1.442695
      %v453 = vpow.pop %v452
      %v454 = vmul.f32 %v428, 1.442695
      %v455 = vpow.pop %v454
      %v456 = vmul.f32 %v429, 1.442695
      %v457 = vpow.pop %v456
      %v458 = vmul.f32 %v430, 1.442695
      %v459 = vpow.pop %v458
      %v460 = vmul.f32 %v431, 1.442695
      %v461 = vpow.pop %v460
      %v462 = vmul.f32 %v432, 1.442695
      %v463 = vpow.pop %v462
      %v464 = vmul.f32 %v433, 1.442695
      %v465 = vpow.pop %v464
      %v466 = vadd.f32 %v435, 1.0
      %v467 = vadd.f32 %v437, 1.0
      %v468 = vadd.f32 %v439, 1.0
      %v469 = vadd.f32 %v441, 1.0
      %v470 = vadd.f32 %v443, 1.0
      %v471 = vadd.f32 %v445, 1.0
      %v472 = vadd.f32 %v447, 1.0
      %v473 = vadd.f32 %v449, 1.0
      %v474 = vadd.f32 %v451, 1.0
      %v475 = vadd.f32 %v453, 1.0
      %v476 = vadd.f32 %v455, 1.0
      %v477 = vadd.f32 %v457, 1.0
      %v478 = vadd.f32 %v459, 1.0
      %v479 = vadd.f32 %v461, 1.0
      %v480 = vadd.f32 %v463, 1.0
      %v481 = vadd.f32 %v465, 1.0
      %v482 = vrcp.pop %v466
      %v483 = vmul.f32 %v466, %v482
      %v484 = vsub.f32 1.0, %v483
      %v485 = vmul.f32 %v482, %v484
      %v486 = vadd.f32 %v482, %v485
      %vm487 = vweird.f32 %v466
      %vm488 = vweird.f32 %v482
      %vm489 = vmor %vm487, %vm488
      %v490 = vsel %vm489, %v482, %v486
      %v491 = vand.u32 2147483647, %v466
      %vm492 = vcmp.eq.f32.partialorder %v491, 8.507059e+37
      %v493 = vand.u32 %v466, 2147483648
      %v494 = vor.u32 1.1754944e-38, %v493
      %v495 = vsel %vm492, %v494, %v490
      %v496 = vmul.f32 1.0, %v495
      %v497 = vrcp.pop %v467
      %v498 = vmul.f32 %v467, %v497
      %v499 = vsub.f32 1.0, %v498
      %v500 = vmul.f32 %v497, %v499
      %v501 = vadd.f32 %v497, %v500
      %vm502 = vweird.f32 %v467
      %vm503 = vweird.f32 %v497
      %vm504 = vmor %vm502, %vm503
      %v505 = vsel %vm504, %v497, %v501
      %v506 = vand.u32 2147483647, %v467
      %vm507 = vcmp.eq.f32.partialorder %v506, 8.507059e+37
      %v508 = vand.u32 %v467, 2147483648
      %v509 = vor.u32 1.1754944e-38, %v508
      %v510 = vsel %vm507, %v509, %v505
      %v511 = vmul.f32 1.0, %v510
      %v512 = vrcp.pop %v468
      %v513 = vmul.f32 %v468, %v512
      %v514 = vsub.f32 1.0, %v513
      %v515 = vmul.f32 %v512, %v514
      %v516 = vadd.f32 %v512, %v515
      %vm517 = vweird.f32 %v468
      %vm518 = vweird.f32 %v512
      %vm519 = vmor %vm517, %vm518
      %v520 = vsel %vm519, %v512, %v516
      %v521 = vand.u32 2147483647, %v468
      %vm522 = vcmp.eq.f32.partialorder %v521, 8.507059e+37
      %v523 = vand.u32 %v468, 2147483648
      %v524 = vor.u32 1.1754944e-38, %v523
      %v525 = vsel %vm522, %v524, %v520
      %v526 = vmul.f32 1.0, %v525
      %v527 = vrcp.pop %v469
      %v528 = vmul.f32 %v469, %v527
      %v529 = vsub.f32 1.0, %v528
      %v530 = vmul.f32 %v527, %v529
      %v531 = vadd.f32 %v527, %v530
      %vm532 = vweird.f32 %v469
      %vm533 = vweird.f32 %v527
      %vm534 = vmor %vm532, %vm533
      %v535 = vsel %vm534, %v527, %v531
      %v536 = vand.u32 2147483647, %v469
      %vm537 = vcmp.eq.f32.partialorder %v536, 8.507059e+37
      %v538 = vand.u32 %v469, 2147483648
      %v539 = vor.u32 1.1754944e-38, %v538
      %v540 = vsel %vm537, %v539, %v535
      %v541 = vmul.f32 1.0, %v540
      %v542 = vrcp.pop %v470
      %v543 = vmul.f32 %v470, %v542
      %v544 = vsub.f32 1.0, %v543
      %v545 = vmul.f32 %v542, %v544
      %v546 = vadd.f32 %v542, %v545
      %vm547 = vweird.f32 %v470
      %vm548 = vweird.f32 %v542
      %vm549 = vmor %vm547, %vm548
      %v550 = vsel %vm549, %v542, %v546
      %v551 = vand.u32 2147483647, %v470
      %vm552 = vcmp.eq.f32.partialorder %v551, 8.507059e+37
      %v553 = vand.u32 %v470, 2147483648
      %v554 = vor.u32 1.1754944e-38, %v553
      %v555 = vsel %vm552, %v554, %v550
      %v556 = vmul.f32 1.0, %v555
      %v557 = vrcp.pop %v471
      %v558 = vmul.f32 %v471, %v557
      %v559 = vsub.f32 1.0, %v558
      %v560 = vmul.f32 %v557, %v559
      %v561 = vadd.f32 %v557, %v560
      %vm562 = vweird.f32 %v471
      %vm563 = vweird.f32 %v557
      %vm564 = vmor %vm562, %vm563
      %v565 = vsel %vm564, %v557, %v561
      %v566 = vand.u32 2147483647, %v471
      %vm567 = vcmp.eq.f32.partialorder %v566, 8.507059e+37
      %v568 = vand.u32 %v471, 2147483648
      %v569 = vor.u32 1.1754944e-38, %v568
      %v570 = vsel %vm567, %v569, %v565
      %v571 = vmul.f32 1.0, %v570
      %v572 = vrcp.pop %v472
      %v573 = vmul.f32 %v472, %v572
      %v574 = vsub.f32 1.0, %v573
      %v575 = vmul.f32 %v572, %v574
      %v576 = vadd.f32 %v572, %v575
      %vm577 = vweird.f32 %v472
      %vm578 = vweird.f32 %v572
      %vm579 = vmor %vm577, %vm578
      %v580 = vsel %vm579, %v572, %v576
      %v581 = vand.u32 2147483647, %v472
      %vm582 = vcmp.eq.f32.partialorder %v581, 8.507059e+37
      %v583 = vand.u32 %v472, 2147483648
      %v584 = vor.u32 1.1754944e-38, %v583
      %v585 = vsel %vm582, %v584, %v580
      %v586 = vmul.f32 1.0, %v585
      %v587 = vrcp.pop %v473
      %v588 = vmul.f32 %v473, %v587
      %v589 = vsub.f32 1.0, %v588
      %v590 = vmul.f32 %v587, %v589
      %v591 = vadd.f32 %v587, %v590
      %vm592 = vweird.f32 %v473
      %vm593 = vweird.f32 %v587
      %vm594 = vmor %vm592, %vm593
      %v595 = vsel %vm594, %v587, %v591
      %v596 = vand.u32 2147483647, %v473
      %vm597 = vcmp.eq.f32.partialorder %v596, 8.507059e+37
      %v598 = vand.u32 %v473, 2147483648
      %v599 = vor.u32 1.1754944e-38, %v598
      %v600 = vsel %vm597, %v599, %v595
      %v601 = vmul.f32 1.0, %v600
      %v602 = vrcp.pop %v474
      %v603 = vmul.f32 %v474, %v602
      %v604 = vsub.f32 1.0, %v603
      %v605 = vmul.f32 %v602, %v604
      %v606 = vadd.f32 %v602, %v605
      %vm607 = vweird.f32 %v474
      %vm608 = vweird.f32 %v602
      %vm609 = vmor %vm607, %vm608
      %v610 = vsel %vm609, %v602, %v606
      %v611 = vand.u32 2147483647, %v474
      %vm612 = vcmp.eq.f32.partialorder %v611, 8.507059e+37
      %v613 = vand.u32 %v474, 2147483648
      %v614 = vor.u32 1.1754944e-38, %v613
      %v615 = vsel %vm612, %v614, %v610
      %v616 = vmul.f32 1.0, %v615
      %v617 = vrcp.pop %v475
      %v618 = vmul.f32 %v475, %v617
      %v619 = vsub.f32 1.0, %v618
      %v620 = vmul.f32 %v617, %v619
      %v621 = vadd.f32 %v617, %v620
      %vm622 = vweird.f32 %v475
      %vm623 = vweird.f32 %v617
      %vm624 = vmor %vm622, %vm623
      %v625 = vsel %vm624, %v617, %v621
      %v626 = vand.u32 2147483647, %v475
      %vm627 = vcmp.eq.f32.partialorder %v626, 8.507059e+37
      %v628 = vand.u32 %v475, 2147483648
      %v629 = vor.u32 1.1754944e-38, %v628
      %v630 = vsel %vm627, %v629, %v625
      %v631 = vmul.f32 1.0, %v630
      %v632 = vrcp.pop %v476
      %v633 = vmul.f32 %v476, %v632
      %v634 = vsub.f32 1.0, %v633
      %v635 = vmul.f32 %v632, %v634
      %v636 = vadd.f32 %v632, %v635
      %vm637 = vweird.f32 %v476
      %vm638 = vweird.f32 %v632
      %vm639 = vmor %vm637, %vm638
      %v640 = vsel %vm639, %v632, %v636
      %v641 = vand.u32 2147483647, %v476
      %vm642 = vcmp.eq.f32.partialorder %v641, 8.507059e+37
      %v643 = vand.u32 %v476, 2147483648
      %v644 = vor.u32 1.1754944e-38, %v643
      %v645 = vsel %vm642, %v644, %v640
      %v646 = vmul.f32 1.0, %v645
      %v647 = vrcp.pop %v477
      %v648 = vmul.f32 %v477, %v647
      %v649 = vsub.f32 1.0, %v648
      %v650 = vmul.f32 %v647, %v649
      %v651 = vadd.f32 %v647, %v650
      %vm652 = vweird.f32 %v477
      %vm653 = vweird.f32 %v647
      %vm654 = vmor %vm652, %vm653
      %v655 = vsel %vm654, %v647, %v651
      %v656 = vand.u32 2147483647, %v477
      %vm657 = vcmp.eq.f32.partialorder %v656, 8.507059e+37
      %v658 = vand.u32 %v477, 2147483648
      %v659 = vor.u32 1.1754944e-38, %v658
      %v660 = vsel %vm657, %v659, %v655
      %v661 = vmul.f32 1.0, %v660
      %v662 = vrcp.pop %v478
      %v663 = vmul.f32 %v478, %v662
      %v664 = vsub.f32 1.0, %v663
      %v665 = vmul.f32 %v662, %v664
      %v666 = vadd.f32 %v662, %v665
      %vm667 = vweird.f32 %v478
      %vm668 = vweird.f32 %v662
      %vm669 = vmor %vm667, %vm668
      %v670 = vsel %vm669, %v662, %v666
      %v671 = vand.u32 2147483647, %v478
      %vm672 = vcmp.eq.f32.partialorder %v671, 8.507059e+37
      %v673 = vand.u32 %v478, 2147483648
      %v674 = vor.u32 1.1754944e-38, %v673
      %v675 = vsel %vm672, %v674, %v670
      %v676 = vmul.f32 1.0, %v675
      %v677 = vrcp.pop %v479
      %v678 = vmul.f32 %v479, %v677
      %v679 = vsub.f32 1.0, %v678
      %v680 = vmul.f32 %v677, %v679
      %v681 = vadd.f32 %v677, %v680
      %vm682 = vweird.f32 %v479
      %vm683 = vweird.f32 %v677
      %vm684 = vmor %vm682, %vm683
      %v685 = vsel %vm684, %v677, %v681
      %v686 = vand.u32 2147483647, %v479
      %vm687 = vcmp.eq.f32.partialorder %v686, 8.507059e+37
      %v688 = vand.u32 %v479, 2147483648
      %v689 = vor.u32 1.1754944e-38, %v688
      %v690 = vsel %vm687, %v689, %v685
      %v691 = vmul.f32 1.0, %v690
      %v692 = vrcp.pop %v480
      %v693 = vmul.f32 %v480, %v692
      %v694 = vsub.f32 1.0, %v693
      %v695 = vmul.f32 %v692, %v694
      %v696 = vadd.f32 %v692, %v695
      %vm697 = vweird.f32 %v480
      %vm698 = vweird.f32 %v692
      %vm699 = vmor %vm697, %vm698
      %v700 = vsel %vm699, %v692, %v696
      %v701 = vand.u32 2147483647, %v480
      %vm702 = vcmp.eq.f32.partialorder %v701, 8.507059e+37
      %v703 = vand.u32 %v480, 2147483648
      %v704 = vor.u32 1.1754944e-38, %v703
      %v705 = vsel %vm702, %v704, %v700
      %v706 = vmul.f32 1.0, %v705
      %v707 = vrcp.pop %v481
      %v708 = vmul.f32 %v481, %v707
      %v709 = vsub.f32 1.0, %v708
      %v710 = vmul.f32 %v707, %v709
      %v711 = vadd.f32 %v707, %v710
      %vm712 = vweird.f32 %v481
      %vm713 = vweird.f32 %v707
      %vm714 = vmor %vm712, %vm713
      %v715 = vsel %vm714, %v707, %v711
      %v716 = vand.u32 2147483647, %v481
      %vm717 = vcmp.eq.f32.partialorder %v716, 8.507059e+37
      %v718 = vand.u32 %v481, 2147483648
      %v719 = vor.u32 1.1754944e-38, %v718
      %v720 = vsel %vm717, %v719, %v715
      %v721 = vmul.f32 1.0, %v720
      %vm722 = vcmask 15360
      %723 = vst.msk [vmem:[%s145] sm:$0xff] %vm722, %v496
      %724 = vst.msk [vmem:[%s145 + $0x8] sm:$0xff] %vm722, %v511
      %725 = vst.msk [vmem:[%s145 + $0x10] sm:$0xff] %vm722, %v526
      %726 = vst.msk [vmem:[%s145 + $0x18] sm:$0xff] %vm722, %v541
      %727 = vst.msk [vmem:[%s145 + $0x20] sm:$0xff] %vm722, %v556
      %728 = vst.msk [vmem:[%s145 + $0x28] sm:$0xff] %vm722, %v571
      %729 = vst.msk [vmem:[%s145 + $0x30] sm:$0xff] %vm722, %v586
      %730 = vst.msk [vmem:[%s145 + $0x38] sm:$0xff] %vm722, %v601
      %731 = vst.msk [vmem:[%s145 + $0x40] sm:$0xff] %vm722, %v616
      %732 = vst.msk [vmem:[%s145 + $0x48] sm:$0xff] %vm722, %v631
      %733 = vst.msk [vmem:[%s145 + $0x50] sm:$0xff] %vm722, %v646
      %734 = vst.msk [vmem:[%s145 + $0x58] sm:$0xff] %vm722, %v661
      %735 = vst.msk [vmem:[%s145 + $0x60] sm:$0xff] %vm722, %v676
      %736 = vst.msk [vmem:[%s145 + $0x68] sm:$0xff] %vm722, %v691
      %737 = vst.msk [vmem:[%s145 + $0x70] sm:$0xff] %vm722, %v706
      %738 = vst.msk [vmem:[%s145 + $0x78] sm:$0xff] %vm722, %v721
      %s739 = smul.u32 16, %s13
      %p740 = scmp.lt.s32.totalorder %s739, 31
      %s741 = scalar_select %p740, %s739, 31
      %s742 = smul.addr %s741, 8
      %s743 = scalar_lea.vmem %s2, %s742
      // Predicated region
      $region29: #{tpu_custom_call.1} parent=27 // pred_check
        %p744 = pneg %p78
      $region30: #{tpu_custom_call.1} parent=27 // pred_check_branch
        %746 = sbr.rel (%p744) target = $region32
      $region31: #{tpu_custom_call.1} parent=27 // pred_region
        %s747 = smul.u32 16, %s13
      $region32: #{tpu_custom_call.1} parent=27 // pred_fallthru
        _
    $region28: #{tpu_custom_call.1} parent=5 // pred_fallthru
      _
    %p748 = scmp.le.s32.totalorder 2, %s8
    // Predicated region
    $region33: #{tpu_custom_call.1} parent=5 // pred_check
      %p749 = pneg %p748
    $region34: #{tpu_custom_call.1} parent=5 // pred_check_branch
      %751 = sbr.rel (%p749) target = $region36
    $region35: #{tpu_custom_call.1} parent=5 // pred_region
      %s752 = ssub.s32 %s8, 2
      // Predicated region
      $region37: #{tpu_custom_call.1} parent=35 // pred_check
        %p753 = pneg %p84
      $region38: #{tpu_custom_call.1} parent=35 // pred_check_branch
        %755 = sbr.rel (%p753) target = $region40
      $region39: #{tpu_custom_call.1} parent=35 // pred_region
        %s756 = smul.u32 16, %s14
        %p757 = scmp.lt.s32.totalorder %s756, 31
        %s758 = scalar_select %p757, %s756, 31
        %s759 = smul.addr %s758, 8
        %s760 = scalar_lea.vmem %s2, %s759
      $region40: #{tpu_custom_call.1} parent=35 // pred_fallthru
        _
    $region36: #{tpu_custom_call.1} parent=5 // pred_fallthru
      _
  $region6: #{tpu_custom_call.1} parent=0 // loop_footer
    %s12 = sadd.s32 1, %s8
  $region7: #{tpu_custom_call.1} parent=0 // loop_footer_branch
    %7 = sbr.rel target = $region3
  $region8: #{tpu_custom_call.1} parent=0 // loop_exit
    _

</llo_original>
